<compile_context>
chip_gen: v7x
topology: tpu7x:2x2x1
jax: 0.10.0
libtpu: 0.0.40
codegen_flags: <defaults>
</compile_context>

<pallas_src>
import jax
import jax.numpy as jnp
from jax.experimental import pallas as pl
from jax.experimental.pallas import tpu as pltpu


# --------------------------------------------------------------------------
# Helpers
# --------------------------------------------------------------------------
def _adaptive_windows(in_size: int, out_size: int):
    """PyTorch AdaptiveMaxPool window bounds: [floor(i*I/O), ceil((i+1)*I/O))."""
    wins = []
    for i in range(out_size):
        start = (i * in_size) // out_size
        end = -((-(i + 1) * in_size) // out_size)  # ceil division
        wins.append((start, end))
    return wins


def _round_up(x: int, m: int) -> int:
    return ((x + m - 1) // m) * m


def _sublanes(itemsize: int) -> int:
    # Sublane packing of the second-minor dim per dtype width.
    return {1: 32, 2: 16}.get(itemsize, 8)


def _vmem_capacity_bytes() -> int:
    try:
        return int(pltpu.get_tpu_info().vmem_capacity_bytes)
    except Exception:
        return 64 << 20  # conservative default (v7x per-TensorCore VMEM)


def _pick_batch_block(N, C, channel_size, HW, wW, itemsize, budget_bytes):
    """Batches per grid step, using *padded* VMEM footprints and alignment."""
    sub = _sublanes(itemsize)
    lane_in = _round_up(HW, 128)
    lane_out = _round_up(wW, 128)

    def legal(nb):
        # Sublane-aligned blocks (dense DMA/stores) unless the block spans the
        # full array (block dims == array dims is always legal).
        return nb == N or ((nb * C) % sub == 0 and (nb * channel_size) % sub == 0)

    def step_bytes(nb):
        # Padded VMEM bytes for ONE input block + ONE output block.
        return (_round_up(nb * C, sub) * lane_in
                + _round_up(nb * channel_size, sub) * lane_out) * itemsize

    divisors = [d for d in range(1, N + 1) if N % d == 0]

    # Largest legal divisor whose double-buffered blocks fit the budget.
    nb = None
    for d in divisors:
        if legal(d) and 2 * step_bytes(d) <= budget_bytes:
            nb = d
    if nb is None:
        # Nothing fits the budget: smallest legal block; vmem_limit_bytes is
        # raised with headroom in the wrapper.
        nb = next((d for d in divisors if legal(d)), N)

    # Give the pipeline (and v7x's two TensorCores) >= 4 steps, but only when
    # every step still moves >= ~1 MiB (otherwise the ~0.35 us/step fixed
    # overhead dominates and single-TC v5e/v6e would just lose bandwidth).
    if N // nb < 4:
        for d in reversed(divisors):
            if d < nb and N // d >= 4 and legal(d) and step_bytes(d) >= (1 << 20):
                nb = d
                break
    return nb


# --------------------------------------------------------------------------
# Kernel
# --------------------------------------------------------------------------
def _make_kernel(nb, C, H, W, channel_size, w):
    HW = H * W
    wW = w * W
    R = nb * channel_size
    c_windows = _adaptive_windows(C, channel_size)
    h_windows = _adaptive_windows(H, w)
    gc = C // channel_size if (channel_size != C and C % channel_size == 0) else None
    gh = H // w if (w != H and H % w == 0) else None

    def reduce_h(y):
        """(rows, H*W) -> (rows, w*W): max over each adaptive H window."""
        rows = y.shape[0]
        if w == H:
            return y                                   # identity, H*W == w*W
        if gh is not None:
            # Uniform windows: gh-1 explicit slice maximums over a
            # (rows, w, gh*W) view (keeps VPU vmax doing the work).
            y3 = y.reshape(rows, w, gh * W)
            acc = y3[:, :, 0:W]
            for j in range(1, gh):
                acc = jnp.maximum(acc, y3[:, :, j * W:(j + 1) * W])
            return acc.reshape(rows, wW)
        # Ragged / overlapping windows (correctness fallback): per-window
        # contiguous lane chunks, output-scale temporaries only.
        parts = []
        for (hs, he) in h_windows:
            blk = y[:, hs * W:he * W].reshape(rows, he - hs, W)
            parts.append(jnp.max(blk, axis=1))
        return jnp.concatenate(parts, axis=-1)

    def kernel(x_ref, o_ref):
        # x_ref: (nb*C, H*W), o_ref: (nb*channel_size, w*W) — both lane-dense.
        x = x_ref[...]                                  # ONE dense load

        if channel_size == C:
            o_ref[...] = reduce_h(x)                    # ONE dense store
        elif gc is not None:
            # Uniform channel windows: row b*C + ci*gc + j == (b*cs + ci)*gc + j,
            # so a pure sublane split + sublane-group max, no lane movement.
            y = jnp.max(x.reshape(R, gc, HW), axis=1)   # (nb*channel_size, HW)
            o_ref[...] = reduce_h(y)
        else:
            # Ragged / overlapping channel windows: reduce each window all the
            # way to output scale first, then assemble one small slab.
            x3 = x.reshape(nb, C, HW)
            outs = []
            for (cs, ce) in c_windows:
                y_c = jnp.max(x3[:, cs:ce, :], axis=1)  # (nb, HW)
                outs.append(reduce_h(y_c))              # (nb, w*W)
            o_ref[...] = jnp.stack(outs, axis=1).reshape(R, wW)

    return kernel


# --------------------------------------------------------------------------
# Wrapper
# --------------------------------------------------------------------------
def channel_adaptive_max_pool2d(x: jax.Array, channel_size: int, w: int, *,
                                force_pallas: bool = False,
                                min_pallas_bytes: int = 1 << 20) -> jax.Array:
    """Equivalent of Channel_Adaptive_Max_2dPooling(channel_size, w).forward(x)."""
    N, C, H, W = x.shape
    HW, wW = H * W, w * W
    itemsize = jnp.dtype(x.dtype).itemsize
    total_bytes = (N * C * HW + N * channel_size * wW) * itemsize

    # Tiny inputs: the Pallas launch is pure fixed overhead — use fused XLA.
    if not force_pallas and total_bytes < min_pallas_bytes:
        return _reference(x, channel_size, w)

    # Generation-aware block-size policy (padded footprints, see header).
    vmem_cap = _vmem_capacity_bytes()
    budget = min(max(vmem_cap // 3, 16 << 20), 40 << 20)
    nb = _pick_batch_block(N, C, channel_size, HW, wW, itemsize, budget)

    sub = _sublanes(itemsize)
    block_bytes = 2 * (_round_up(nb * C, sub) * _round_up(HW, 128)
                       + _round_up(nb * channel_size, sub) * _round_up(wW, 128)) * itemsize
    vmem_limit = int(min(max(32 << 20, block_bytes + (8 << 20)),
                         max(vmem_cap - (4 << 20), 16 << 20)))

    kernel = _make_kernel(nb, C, H, W, channel_size, w)

    # Batch folded into the sublane axis: fully packed 2-D DMAs and stores.
    x2 = x.reshape(N * C, HW)

    cost = pl.CostEstimate(
        flops=N * C * HW,            # ~one compare per input element
        transcendentals=0,
        bytes_accessed=total_bytes,
    )

    out2 = pl.pallas_call(
        kernel,
        out_shape=jax.ShapeDtypeStruct((N * channel_size, wW), x.dtype),
        grid=(N // nb,),
        in_specs=[pl.BlockSpec((nb * C, HW), lambda n: (n, 0))],
        out_specs=pl.BlockSpec((nb * channel_size, wW), lambda n: (n, 0)),
        compiler_params=pltpu.CompilerParams(
            dimension_semantics=("parallel",),
            vmem_limit_bytes=vmem_limit,
        ),
        cost_estimate=cost,
    )(x2)

    return out2.reshape(N, channel_size, w, W)


# --------------------------------------------------------------------------
# Pure-JAX reference (replicates the PyTorch forward pass; also the tiny-input
# XLA fallback path).
# --------------------------------------------------------------------------
def _reference(x: jax.Array, channel_size: int, w: int) -> jax.Array:
    N, C, H, W = x.shape
    c_windows = _adaptive_windows(C, channel_size)
    h_windows = _adaptive_windows(H, w)
    co_rows = []
    for (cs, ce) in c_windows:
        ho_rows = []
        for (hs, he) in h_windows:
            ho_rows.append(jnp.max(x[:, cs:ce, hs:he, :], axis=(1, 2)))  # (N, W)
        co_rows.append(jnp.stack(ho_rows, axis=1))                       # (N, w, W)
    return jnp.stack(co_rows, axis=1)                                    # (N, cs, w, W)


if __name__ == "__main__":
    # Module config: channel_size = 2 (channel count after pooling),
    # w = 16 (= input tensor size of x[-1], per the module's docstring).
    channel_size = 2
    w = 16

    key = jax.random.PRNGKey(0)
    x = jax.random.normal(key, (2, 4, 16, 16), dtype=jnp.float32)  # NCHW

    ref = _reference(x, channel_size, w)

    # Force the Pallas path at this (tiny) demo shape so the kernel itself runs.
    out = channel_adaptive_max_pool2d(x, channel_size, w, force_pallas=True)
    out = jax.block_until_ready(out)
    assert out.shape == (2, channel_size, w, 16), out.shape
    assert jnp.allclose(out, ref), "Pallas output does not match reference"

    # Auto-dispatch (tiny input -> plain XLA fallback) must agree as well.
    out_auto = jax.block_until_ready(channel_adaptive_max_pool2d(x, channel_size, w))
    assert jnp.allclose(out_auto, ref), "Fallback output does not match reference"

    print("KERNEL_OK")
</pallas_src>

<mosaic_0001>
module attributes {stable_mosaic.version = 11 : i64} {
  func.func @kernel(%arg0: i32, %arg1: memref<8x256xf32, #tpu.memory_space<vmem>>, %arg2: memref<4x256xf32, #tpu.memory_space<vmem>>) attributes {dimension_semantics = [#tpu.dimension_semantics<parallel>], iteration_bounds = array<i64: 1>, scalar_prefetch = 0 : i64, scratch_operands = 0 : i64, tpu.core_type = #tpu.core_type<tc>, window_params = [{transform_indices = @transform_0, window_bounds = array<i64: 8, 256>}, {transform_indices = @transform_1, window_bounds = array<i64: 4, 256>}]} {
    %c0 = arith.constant 0 : index
    %c0_0 = arith.constant 0 : index
    %0 = vector.load %arg1[%c0, %c0_0] : memref<8x256xf32, #tpu.memory_space<vmem>>, vector<8x256xf32>
    %1 = vector.shape_cast %0 : vector<8x256xf32> to vector<4x2x256xf32>
    %cst = arith.constant dense<0xFF800000> : vector<4x256xf32>
    %2 = vector.multi_reduction <maximumf>, %1, %cst [1] : vector<4x2x256xf32> to vector<4x256xf32>
    %c0_1 = arith.constant 0 : index
    %c0_2 = arith.constant 0 : index
    %3 = vector.load %arg2[%c0_1, %c0_2] : memref<4x256xf32, #tpu.memory_space<vmem>>, vector<4x256xf32>
    tpu.vector_store %arg2[%c0_1, %c0_2], %2 {strides = array<i32>} : memref<4x256xf32, #tpu.memory_space<vmem>>, vector<4x256xf32>,
    return
  }
  func.func @transform_0(%arg0: i32) -> (i32, i32) {
    %c0_i32 = arith.constant 0 : i32
    %c0_i32_0 = arith.constant 0 : i32
    return %arg0, %c0_i32 : i32, i32
  }
  func.func @transform_1(%arg0: i32) -> (i32, i32) {
    %c0_i32 = arith.constant 0 : i32
    %c0_i32_0 = arith.constant 0 : i32
    return %arg0, %c0_i32 : i32, i32
  }
}

</mosaic_0001>

<llo_original>
// kernel: tpu_custom_call.1
$region0: #{tpu_custom_call.1}
  #allocation0 [shape = 'u32[]', space=smem, size = 0x4, offset = 0x4, fixed_abs, tag = 'smem constant byte address 0x4 - core index']
  #allocation1 [shape = 'u32[144,128]{1,0:T(1,128)}', space=vmem, size = 0x12000, scoped, tag = 'internal scratch']
  %s0 = inlined_call_operand.hbm [shape: f32[8,256], index: 0, kind: input, shape index: {}]
  %s1 = inlined_call_operand.hbm [shape: f32[4,256], index: 1, kind: output, shape index: {}]
  %s2 = sld [smem:[#allocation0]]
  $region18: #{tpu_custom_call.1} parent=0
    _
  %s4 = ssub.s32 1, %s2
  %s5 = scalar_select 0, %s4, %s2
  $region1: #{tpu_custom_call.1} parent=0
    #allocation2 [shape = 'u8[8192]{0}', space=vmem, size = 0x2000, scoped, tag = 'input window, operand 0, single buffered']
    #allocation3 [shape = 's32[1]{0}', space=sflag, size = 0x4, scoped, tag = 'scoped memory for tpu_custom_call.1']
    #allocation4 [shape = 's32[1]{0}', space=sflag, size = 0x4, scoped, tag = 'scoped memory for tpu_custom_call.1']
    #allocation5 [shape = 'u8[4096]{0}', space=vmem, size = 0x1000, scoped, tag = 'output window, operand 0, single buffered']
    %6 = vsyncpa [#allocation3], 0
    %7 = vsyncpa [#allocation4], 0
    // Predicated region
    $region2: #{tpu_custom_call.1} parent=1 // pred_check
      _
    $region3: #{tpu_custom_call.1} parent=1 // pred_check_branch
      %9 = sbr.rel (0) target = $region5
    $region4: #{tpu_custom_call.1} parent=1 // pred_region
      %s11 = ssub.s32 256, 256
      %12 = vsyncadd [#allocation3], %s11
      %s14 = sshll.u32 [#allocation2], 4
      %s15 = int_to_ptr.vmem [resolvable:$true] %s14
      %17 = dma.hbm_to_vmem [thread:$0]  %s0, 256, %s15, [#allocation3]
    $region5: #{tpu_custom_call.1} parent=1 // pred_fallthru
      _
    // Predicated region
    $region6: #{tpu_custom_call.1} parent=1 // pred_check
      _
    $region7: #{tpu_custom_call.1} parent=1 // pred_check_branch
      %19 = sbr.rel (0) target = $region9
    $region8: #{tpu_custom_call.1} parent=1 // pred_region
      %20 = dma.done [#allocation3], 256
    $region9: #{tpu_custom_call.1} parent=1 // pred_fallthru
      _
    %v21 = vld [vmem:[#allocation2] sm:$0xff]
    %v22 = vld [vmem:[#allocation2 + $0x8] sm:$0xff]
    %v25 = vcombine.low %v21, %v22
    %v26 = vcombine.high %v21, %v22
    %v28 = vunpack.c.l.s4 1983009808
    %v29 = vunpack.c.0.s8 %v28
    %v30 = vlaneseq
    %v31 = vshrl.u32 %v30, 7
    %v32 = vsub.s32 %v29, %v31
    %v33 = vrot.slane %v25, %v32
    %v35 = vunpack.c.l.s4 1983009808
    %v36 = vunpack.c.0.s8 %v35
    %v37 = vlaneseq
    %v38 = vshrl.u32 %v37, 7
    %v39 = vsub.s32 %v36, %v38
    %v40 = vrot.slane %v26, %v39
    %v41 = vcombine.high %v33, %v33
    %v42 = vcombine.high %v40, %v40
    %v44 = vunpack.c.l.s4 1983009808
    %v45 = vunpack.c.0.s8 %v44
    %v46 = vlaneseq
    %v47 = vshrl.u32 %v46, 7
    %v48 = vsub.s32 %v45, %v47
    %v49 = vrot.slane %v33, %v48
    %v50 = vcombine.high %v49, %v49
    %v52 = vunpack.c.l.s4 1983009808
    %v53 = vunpack.c.0.s8 %v52
    %v54 = vlaneseq
    %v55 = vshrl.u32 %v54, 7
    %v56 = vsub.s32 %v53, %v55
    %v57 = vrot.slane %v41, %v56
    %v58 = vcombine.high %v57, %v57
    %v60 = vunpack.c.l.s4 1983009808
    %v61 = vunpack.c.0.s8 %v60
    %v62 = vlaneseq
    %v63 = vshrl.u32 %v62, 7
    %v64 = vsub.s32 %v61, %v63
    %v65 = vrot.slane %v40, %v64
    %v66 = vcombine.high %v65, %v65
    %v68 = vunpack.c.l.s4 1983009808
    %v69 = vunpack.c.0.s8 %v68
    %v70 = vlaneseq
    %v71 = vshrl.u32 %v70, 7
    %v72 = vsub.s32 %v69, %v71
    %v73 = vrot.slane %v42, %v72
    %v74 = vcombine.high %v73, %v73
    %vm83 = vcmask 1041408
    %v84 = vsel %vm83, %v49, -inf
    %v85 = vrot.slane %v84, 4
    %v86 = vmax.f32 %v84, %v85
    %v87 = vrot.slane %v86, 2
    %v88 = vmax.f32 %v86, %v87
    %v89 = vrot.slane %v88, 1
    %v90 = vmax.f32 %v88, %v89
    %v91 = vsel %vm83, %v50, -inf
    %v92 = vrot.slane %v91, 4
    %v93 = vmax.f32 %v91, %v92
    %v94 = vrot.slane %v93, 2
    %v95 = vmax.f32 %v93, %v94
    %v96 = vrot.slane %v95, 1
    %v97 = vmax.f32 %v95, %v96
    %v98 = vsel %vm83, %v57, -inf
    %v99 = vrot.slane %v98, 4
    %v100 = vmax.f32 %v98, %v99
    %v101 = vrot.slane %v100, 2
    %v102 = vmax.f32 %v100, %v101
    %v103 = vrot.slane %v102, 1
    %v104 = vmax.f32 %v102, %v103
    %v105 = vsel %vm83, %v58, -inf
    %v106 = vrot.slane %v105, 4
    %v107 = vmax.f32 %v105, %v106
    %v108 = vrot.slane %v107, 2
    %v109 = vmax.f32 %v107, %v108
    %v110 = vrot.slane %v109, 1
    %v111 = vmax.f32 %v109, %v110
    %v112 = vsel %vm83, %v65, -inf
    %v113 = vrot.slane %v112, 4
    %v114 = vmax.f32 %v112, %v113
    %v115 = vrot.slane %v114, 2
    %v116 = vmax.f32 %v114, %v115
    %v117 = vrot.slane %v116, 1
    %v118 = vmax.f32 %v116, %v117
    %v119 = vsel %vm83, %v66, -inf
    %v120 = vrot.slane %v119, 4
    %v121 = vmax.f32 %v119, %v120
    %v122 = vrot.slane %v121, 2
    %v123 = vmax.f32 %v121, %v122
    %v124 = vrot.slane %v123, 1
    %v125 = vmax.f32 %v123, %v124
    %v126 = vsel %vm83, %v73, -inf
    %v127 = vrot.slane %v126, 4
    %v128 = vmax.f32 %v126, %v127
    %v129 = vrot.slane %v128, 2
    %v130 = vmax.f32 %v128, %v129
    %v131 = vrot.slane %v130, 1
    %v132 = vmax.f32 %v130, %v131
    %v133 = vsel %vm83, %v74, -inf
    %v134 = vrot.slane %v133, 4
    %v135 = vmax.f32 %v133, %v134
    %v136 = vrot.slane %v135, 2
    %v137 = vmax.f32 %v135, %v136
    %v138 = vrot.slane %v137, 1
    %v139 = vmax.f32 %v137, %v138
    %v148 = vcombine.low %v90, %v97
    %v149 = vcombine.low %v104, %v111
    %v150 = vcombine.low %v118, %v125
    %v151 = vcombine.low %v132, %v139
    %v152 = vrot.slane %v149, 7
    %vm153 = vcmask 1041409
    %v154 = vsel %vm153, %v152, %v148
    %vm155 = vcmask 1045509
    %v156 = vsel %vm155, %v152, %v154
    %v157 = vrot.slane %v150, 6
    %vm158 = vcmask 1042434
    %v159 = vsel %vm158, %v157, %v156
    %vm160 = vcmask 1046534
    %v161 = vsel %vm160, %v157, %v159
    %v162 = vrot.slane %v151, 5
    %vm163 = vcmask 1043459
    %v164 = vsel %vm163, %v162, %v161
    %vm165 = vcmask 1047559
    %v166 = vsel %vm165, %v162, %v164
    %168 = vst [vmem:[#allocation5] sm:$0xff] %v166
    // Predicated region
    $region10: #{tpu_custom_call.1} parent=1 // pred_check
      _
    $region11: #{tpu_custom_call.1} parent=1 // pred_check_branch
      %170 = sbr.rel (0) target = $region13
    $region12: #{tpu_custom_call.1} parent=1 // pred_region
      %s172 = ssub.s32 128, 128
      %173 = vsyncadd [#allocation4], %s172
      %s175 = sshll.u32 [#allocation5], 4
      %s176 = int_to_ptr.vmem [resolvable:$true] %s175
      %178 = dma.vmem_to_hbm [thread:$0]  %s176, 128, %s1, [#allocation4]
    $region13: #{tpu_custom_call.1} parent=1 // pred_fallthru
      _
    // Predicated region
    $region14: #{tpu_custom_call.1} parent=1 // pred_check
      _
    $region15: #{tpu_custom_call.1} parent=1 // pred_check_branch
      %180 = sbr.rel (0) target = $region17
    $region16: #{tpu_custom_call.1} parent=1 // pred_region
      %181 = dma.done [#allocation4], 128
    $region17: #{tpu_custom_call.1} parent=1 // pred_fallthru
      _
    %182 = vsyncpa [#allocation3], 1
    %183 = vsyncpa [#allocation4], 1

</llo_original>
